<compile_context>
chip_gen: v7x
topology: tpu7x:2x2x1
jax: 0.10.0
libtpu: 0.0.40
codegen_flags: <defaults>
</compile_context>

<pallas_src>
import math
import functools

import jax
import jax.numpy as jnp
from jax.experimental import pallas as pl
from jax.experimental.pallas import tpu as pltpu


# ----------------------------- kernel helpers -----------------------------

def _erf(x):
    # Abramowitz & Stegun 7.1.26 rational approximation, |err| < 1.5e-7
    # (below f32 noise) -- avoids relying on an erf lowering inside Mosaic.
    p = 0.3275911
    a1, a2, a3, a4, a5 = 0.254829592, -0.284496736, 1.421413741, -1.453152027, 1.061405429
    s = jnp.where(x >= 0.0, 1.0, -1.0)
    ax = jnp.abs(x)
    t = 1.0 / (1.0 + p * ax)
    poly = ((((a5 * t + a4) * t + a3) * t + a2) * t + a1) * t
    return s * (1.0 - poly * jnp.exp(-ax * ax))


def _gelu_exact(x):
    # torch nn.GELU() default (exact, erf-based)
    return 0.5 * x * (1.0 + _erf(x * (1.0 / math.sqrt(2.0))))


# --------------------------------- kernel ----------------------------------

def gate_kernel(x1_ref, x2_ref, w_ref, b_ref, fcw_ref, fcb_ref,
                out_ref, xpad, *, tau):
    B, L1, D = x1_ref.shape
    L2 = x2_ref.shape[1]
    L = L1 + L2
    H = w_ref.shape[1]

    # Assemble the zero-padded, concatenated sequence in VMEM: (B, L+2, D).
    zrow = jnp.zeros((B, 1, D), jnp.float32)
    xpad[:, 0:1, :] = zrow
    xpad[:, L + 1:L + 2, :] = zrow
    xpad[:, 1:1 + L1, :] = x1_ref[...]
    xpad[:, 1 + L1:1 + L, :] = x2_ref[...]

    # Conv1d(k=3, pad=1) with BatchNorm folded into the weights, as a single
    # matmul over the whole batch: im2col (B*L, 3D) @ (3D, H).
    lhs = jnp.concatenate(
        [xpad[:, 0:L, :], xpad[:, 1:L + 1, :], xpad[:, 2:L + 2, :]], axis=-1)
    lhs = lhs.reshape(B * L, 3 * D)
    y = jnp.dot(lhs, w_ref[...], preferred_element_type=jnp.float32) + b_ref[...]
    y = _gelu_exact(y)                                       # (B*L, H)

    # AdaptiveAvgPool1d(1): mean over the sequence, per batch element.
    pooled = jnp.mean(y.reshape(B, L, H), axis=1)            # (B, H)

    # fc projection for the whole batch in one call.
    logits = jnp.dot(pooled, fcw_ref[...],
                     preferred_element_type=jnp.float32) + fcb_ref[...]   # (B, bnum)

    # DiffSoftmax (hard=False path): softmax(logits / tau).
    z = logits * (1.0 / tau)
    z = z - jnp.max(z, axis=-1, keepdims=True)
    e = jnp.exp(z)
    out_ref[...] = e / jnp.sum(e, axis=-1, keepdims=True)


# --------------------------------- wrapper ---------------------------------

def cnn1_gate_forward(x1, x2, params, temp=1.0, hard=False):
    # TODO(synk): hard=True straight-through (argmax scatter to one-hot) not
    # implemented; default hard=False path only.
    assert not hard
    B, L1, D = x1.shape
    L2 = x2.shape[1]
    L = L1 + L2
    H = params["conv_w"].shape[-1]
    bnum = params["fc_w"].shape[-1]

    # Fold inference-mode BatchNorm into the conv weight / bias (trace time).
    eps = 1e-5
    scale = params["bn_gamma"] * jax.lax.rsqrt(params["bn_var"] + eps)    # (1, H)
    w_fused = (params["conv_w"] * scale.reshape(1, 1, H)).reshape(3 * D, H)
    b_fused = (params["conv_b"] - params["bn_mean"]) * scale + params["bn_beta"]  # (1, H)

    kernel = functools.partial(gate_kernel, tau=float(temp))

    grid_spec = pltpu.PrefetchScalarGridSpec(
        num_scalar_prefetch=0,
        grid=(1,),
        in_specs=[
            pl.BlockSpec((B, L1, D), lambda i: (0, 0, 0)),    # x1
            pl.BlockSpec((B, L2, D), lambda i: (0, 0, 0)),    # x2
            pl.BlockSpec((3 * D, H), lambda i: (0, 0)),       # fused conv+BN weight
            pl.BlockSpec((1, H), lambda i: (0, 0)),           # fused conv+BN bias
            pl.BlockSpec((H, bnum), lambda i: (0, 0)),        # fc weight
            pl.BlockSpec((1, bnum), lambda i: (0, 0)),        # fc bias
        ],
        out_specs=pl.BlockSpec((B, bnum), lambda i: (0, 0)),
        scratch_shapes=[pltpu.VMEM((B, L + 2, D), jnp.float32)],
    )

    soft = pl.pallas_call(
        kernel,
        out_shape=jax.ShapeDtypeStruct((B, bnum), jnp.float32),
        grid_spec=grid_spec,
        compiler_params=pltpu.CompilerParams(dimension_semantics=("arbitrary",)),
    )(x1, x2, w_fused, b_fused, params["fc_w"], params["fc_b"])

    # DiffSoftmax(hard=False) returns (y_soft, y_soft).
    return soft, soft


# ------------------------ pure-JAX reference (check) ------------------------

def ref_forward(x1, x2, params, temp=1.0):
    x = jnp.concatenate([x1, x2], axis=1)                  # (B, L, D)
    xt = jnp.transpose(x, (0, 2, 1))                       # (B, D, L)  (NCL, as torch)
    w_oih = jnp.transpose(params["conv_w"], (2, 1, 0))     # (H, D, 3)
    y = jax.lax.conv_general_dilated(
        xt, w_oih, window_strides=(1,), padding=((1, 1),),
        dimension_numbers=("NCH", "OIH", "NCH"))           # (B, H, L)
    y = y + params["conv_b"].reshape(1, -1, 1)
    inv_std = jax.lax.rsqrt(params["bn_var"].reshape(1, -1, 1) + 1e-5)
    y = ((y - params["bn_mean"].reshape(1, -1, 1)) * inv_std
         * params["bn_gamma"].reshape(1, -1, 1) + params["bn_beta"].reshape(1, -1, 1))
    y = jax.nn.gelu(y, approximate=False)
    pooled = jnp.mean(y, axis=-1)                          # (B, H)
    logits = pooled @ params["fc_w"] + params["fc_b"]      # (B, bnum)
    soft = jax.nn.softmax(logits / temp, axis=-1)
    return soft, soft


# ----------------------------------- main -----------------------------------

if __name__ == "__main__":
    B, L1, L2 = 2, 4, 4
    D, H, BNUM = 128, 32, 4          # dim, hidden_dim, branch_num

    key = jax.random.PRNGKey(0)
    ks = jax.random.split(key, 10)

    params = {
        "conv_w":  (jax.random.normal(ks[0], (3, D, H), jnp.float32)
                    * (1.0 / math.sqrt(3 * D))),
        "conv_b":  0.1 * jax.random.normal(ks[1], (1, H), jnp.float32),
        "bn_gamma": 1.0 + 0.1 * jax.random.normal(ks[2], (1, H), jnp.float32),
        "bn_beta":  0.1 * jax.random.normal(ks[3], (1, H), jnp.float32),
        "bn_mean":  0.1 * jax.random.normal(ks[4], (1, H), jnp.float32),
        "bn_var":   jnp.abs(1.0 + 0.1 * jax.random.normal(ks[5], (1, H), jnp.float32)),
        "fc_w":    (jax.random.normal(ks[6], (H, BNUM), jnp.float32)
                    * (1.0 / math.sqrt(H))),
        "fc_b":    0.1 * jax.random.normal(ks[7], (1, BNUM), jnp.float32),
    }

    x1 = jax.random.normal(ks[8], (B, L1, D), jnp.float32)
    x2 = jax.random.normal(ks[9], (B, L2, D), jnp.float32)

    logits, y_soft = cnn1_gate_forward(x1, x2, params, temp=1.0, hard=False)
    jax.block_until_ready((logits, y_soft))

    ref_logits, ref_soft = ref_forward(x1, x2, params, temp=1.0)
    assert logits.shape == (B, BNUM) and y_soft.shape == (B, BNUM)
    assert jnp.allclose(logits, ref_logits, atol=5e-5, rtol=5e-5)
    assert jnp.allclose(y_soft, ref_soft, atol=5e-5, rtol=5e-5)

    print("KERNEL_OK")
</pallas_src>

<mosaic_0001>
module attributes {stable_mosaic.version = 11 : i64} {
  func.func @gate_kernel(%arg0: i32, %arg1: memref<2x4x128xf32, #tpu.memory_space<vmem>>, %arg2: memref<2x4x128xf32, #tpu.memory_space<vmem>>, %arg3: memref<384x32xf32, #tpu.memory_space<vmem>>, %arg4: memref<1x32xf32, #tpu.memory_space<vmem>>, %arg5: memref<32x4xf32, #tpu.memory_space<vmem>>, %arg6: memref<1x4xf32, #tpu.memory_space<vmem>>, %arg7: memref<2x4xf32, #tpu.memory_space<vmem>>, %arg8: memref<2x10x128xf32, #tpu.memory_space<vmem>>) attributes {dimension_semantics = [#tpu.dimension_semantics<arbitrary>], iteration_bounds = array<i64: 1>, scalar_prefetch = 0 : i64, scratch_operands = 1 : i64, tpu.core_type = #tpu.core_type<tc>, window_params = [{pipeline_mode = #tpu.pipeline_mode<synchronous>, transform_indices = @transform_0, window_bounds = array<i64: 2, 4, 128>}, {pipeline_mode = #tpu.pipeline_mode<synchronous>, transform_indices = @transform_1, window_bounds = array<i64: 2, 4, 128>}, {pipeline_mode = #tpu.pipeline_mode<synchronous>, transform_indices = @transform_2, window_bounds = array<i64: 384, 32>}, {pipeline_mode = #tpu.pipeline_mode<synchronous>, transform_indices = @transform_3, window_bounds = array<i64: 1, 32>}, {pipeline_mode = #tpu.pipeline_mode<synchronous>, transform_indices = @transform_4, window_bounds = array<i64: 32, 4>}, {pipeline_mode = #tpu.pipeline_mode<synchronous>, transform_indices = @transform_5, window_bounds = array<i64: 1, 4>}, {pipeline_mode = #tpu.pipeline_mode<synchronous>, transform_indices = @transform_6, window_bounds = array<i64: 2, 4>}]} {
    %cst = arith.constant 0.000000e+00 : f32
    %0 = vector.broadcast %cst : f32 to vector<2x1x128xf32>
    %c0 = arith.constant 0 : index
    %c0_0 = arith.constant 0 : index
    %c0_1 = arith.constant 0 : index
    %1 = vector.load %arg8[%c0, %c0_0, %c0_1] : memref<2x10x128xf32, #tpu.memory_space<vmem>>, vector<2x1x128xf32>
    tpu.vector_store %arg8[%c0, %c0_0, %c0_1], %0 {strides = array<i32>} : memref<2x10x128xf32, #tpu.memory_space<vmem>>, vector<2x1x128xf32>,
    %c0_2 = arith.constant 0 : index
    %c9 = arith.constant 9 : index
    %c0_3 = arith.constant 0 : index
    %2 = vector.load %arg8[%c0_2, %c9, %c0_3] : memref<2x10x128xf32, #tpu.memory_space<vmem>>, vector<2x1x128xf32>
    tpu.vector_store %arg8[%c0_2, %c9, %c0_3], %0 {strides = array<i32>} : memref<2x10x128xf32, #tpu.memory_space<vmem>>, vector<2x1x128xf32>,
    %c0_4 = arith.constant 0 : index
    %c0_5 = arith.constant 0 : index
    %c0_6 = arith.constant 0 : index
    %3 = vector.load %arg1[%c0_4, %c0_5, %c0_6] : memref<2x4x128xf32, #tpu.memory_space<vmem>>, vector<2x4x128xf32>
    %c0_7 = arith.constant 0 : index
    %c1 = arith.constant 1 : index
    %c0_8 = arith.constant 0 : index
    %4 = vector.load %arg8[%c0_7, %c1, %c0_8] : memref<2x10x128xf32, #tpu.memory_space<vmem>>, vector<2x4x128xf32>
    tpu.vector_store %arg8[%c0_7, %c1, %c0_8], %3 {strides = array<i32>} : memref<2x10x128xf32, #tpu.memory_space<vmem>>, vector<2x4x128xf32>,
    %c0_9 = arith.constant 0 : index
    %c0_10 = arith.constant 0 : index
    %c0_11 = arith.constant 0 : index
    %5 = vector.load %arg2[%c0_9, %c0_10, %c0_11] : memref<2x4x128xf32, #tpu.memory_space<vmem>>, vector<2x4x128xf32>
    %c0_12 = arith.constant 0 : index
    %c5 = arith.constant 5 : index
    %c0_13 = arith.constant 0 : index
    %6 = vector.load %arg8[%c0_12, %c5, %c0_13] : memref<2x10x128xf32, #tpu.memory_space<vmem>>, vector<2x4x128xf32>
    tpu.vector_store %arg8[%c0_12, %c5, %c0_13], %5 {strides = array<i32>} : memref<2x10x128xf32, #tpu.memory_space<vmem>>, vector<2x4x128xf32>,
    %c0_14 = arith.constant 0 : index
    %c0_15 = arith.constant 0 : index
    %c0_16 = arith.constant 0 : index
    %7 = vector.load %arg8[%c0_14, %c0_15, %c0_16] : memref<2x10x128xf32, #tpu.memory_space<vmem>>, vector<2x8x128xf32>
    %c0_17 = arith.constant 0 : index
    %c1_18 = arith.constant 1 : index
    %c0_19 = arith.constant 0 : index
    %8 = vector.load %arg8[%c0_17, %c1_18, %c0_19] : memref<2x10x128xf32, #tpu.memory_space<vmem>>, vector<2x8x128xf32>
    %c0_20 = arith.constant 0 : index
    %c2 = arith.constant 2 : index
    %c0_21 = arith.constant 0 : index
    %9 = vector.load %arg8[%c0_20, %c2, %c0_21] : memref<2x10x128xf32, #tpu.memory_space<vmem>>, vector<2x8x128xf32>
    %10 = tpu.concatenate %7, %8, %9 in 2 : vector<2x8x128xf32>, vector<2x8x128xf32>, vector<2x8x128xf32> -> vector<2x8x384xf32>
    %11 = vector.shape_cast %10 : vector<2x8x384xf32> to vector<16x384xf32>
    %c0_22 = arith.constant 0 : index
    %c0_23 = arith.constant 0 : index
    %12 = vector.load %arg3[%c0_22, %c0_23] : memref<384x32xf32, #tpu.memory_space<vmem>>, vector<384x32xf32>
    %cst_24 = arith.constant dense<0.000000e+00> : vector<16x32xf32>
    %13 = tpu.matmul %11, %12, %cst_24 {dimension_numbers = #tpu.dot_dimension_numbers<[1], [0], [0], [1], [0, 0, 1, 1], [], []>} : vector<16x384xf32>, vector<384x32xf32>, vector<16x32xf32> -> vector<16x32xf32>
    %c0_25 = arith.constant 0 : index
    %c0_26 = arith.constant 0 : index
    %14 = vector.load %arg4[%c0_25, %c0_26] : memref<1x32xf32, #tpu.memory_space<vmem>>, vector<1x32xf32>
    %15 = vector.broadcast %14 : vector<1x32xf32> to vector<16x32xf32>
    %16 = arith.addf %13, %15 : vector<16x32xf32>
    %cst_27 = arith.constant 5.000000e-01 : f32
    %17 = vector.broadcast %cst_27 : f32 to vector<16x32xf32>
    %18 = arith.mulf %17, %16 : vector<16x32xf32>
    %cst_28 = arith.constant 0.707106769 : f32
    %19 = vector.broadcast %cst_28 : f32 to vector<16x32xf32>
    %20 = arith.mulf %16, %19 : vector<16x32xf32>
    %cst_29 = arith.constant 0.000000e+00 : f32
    %21 = vector.broadcast %cst_29 : f32 to vector<16x32xf32>
    %22 = arith.cmpf oge, %20, %21 : vector<16x32xf32>
    %cst_30 = arith.constant 1.000000e+00 : f32
    %cst_31 = arith.constant -1.000000e+00 : f32
    %23 = vector.broadcast %cst_30 : f32 to vector<16x32xf32>
    %24 = vector.broadcast %cst_31 : f32 to vector<16x32xf32>
    %25 = arith.select %22, %23, %24 : vector<16x32xi1>, vector<16x32xf32>
    %26 = math.absf %20 : vector<16x32xf32>
    %cst_32 = arith.constant 0.327591091 : f32
    %27 = vector.broadcast %cst_32 : f32 to vector<16x32xf32>
    %28 = arith.mulf %27, %26 : vector<16x32xf32>
    %cst_33 = arith.constant 1.000000e+00 : f32
    %29 = vector.broadcast %cst_33 : f32 to vector<16x32xf32>
    %30 = arith.addf %29, %28 : vector<16x32xf32>
    %cst_34 = arith.constant 1.000000e+00 : f32
    %31 = vector.broadcast %cst_34 : f32 to vector<16x32xf32>
    %32 = arith.divf %31, %30 : vector<16x32xf32>
    %cst_35 = arith.constant 1.06140542 : f32
    %33 = vector.broadcast %cst_35 : f32 to vector<16x32xf32>
    %34 = arith.mulf %33, %32 : vector<16x32xf32>
    %cst_36 = arith.constant -1.45315206 : f32
    %35 = vector.broadcast %cst_36 : f32 to vector<16x32xf32>
    %36 = arith.addf %34, %35 : vector<16x32xf32>
    %37 = arith.mulf %36, %32 : vector<16x32xf32>
    %cst_37 = arith.constant 1.42141378 : f32
    %38 = vector.broadcast %cst_37 : f32 to vector<16x32xf32>
    %39 = arith.addf %37, %38 : vector<16x32xf32>
    %40 = arith.mulf %39, %32 : vector<16x32xf32>
    %cst_38 = arith.constant -0.284496725 : f32
    %41 = vector.broadcast %cst_38 : f32 to vector<16x32xf32>
    %42 = arith.addf %40, %41 : vector<16x32xf32>
    %43 = arith.mulf %42, %32 : vector<16x32xf32>
    %cst_39 = arith.constant 0.254829586 : f32
    %44 = vector.broadcast %cst_39 : f32 to vector<16x32xf32>
    %45 = arith.addf %43, %44 : vector<16x32xf32>
    %46 = arith.mulf %45, %32 : vector<16x32xf32>
    %cst_40 = arith.constant 0.000000e+00 : f32
    %47 = vector.broadcast %cst_40 : f32 to vector<16x32xf32>
    %48 = arith.subf %47, %26 : vector<16x32xf32>
    %49 = arith.mulf %48, %26 : vector<16x32xf32>
    %50 = math.exp %49 : vector<16x32xf32>
    %51 = arith.mulf %46, %50 : vector<16x32xf32>
    %cst_41 = arith.constant 1.000000e+00 : f32
    %52 = vector.broadcast %cst_41 : f32 to vector<16x32xf32>
    %53 = arith.subf %52, %51 : vector<16x32xf32>
    %54 = arith.mulf %25, %53 : vector<16x32xf32>
    %cst_42 = arith.constant 1.000000e+00 : f32
    %55 = vector.broadcast %cst_42 : f32 to vector<16x32xf32>
    %56 = arith.addf %55, %54 : vector<16x32xf32>
    %57 = arith.mulf %18, %56 : vector<16x32xf32>
    %58 = vector.shape_cast %57 : vector<16x32xf32> to vector<2x8x32xf32>
    %cst_43 = arith.constant dense<0.000000e+00> : vector<2x32xf32>
    %59 = vector.multi_reduction <add>, %58, %cst_43 [1] : vector<2x8x32xf32> to vector<2x32xf32>
    %cst_44 = arith.constant 8.000000e+00 : f32
    %60 = vector.broadcast %cst_44 : f32 to vector<2x32xf32>
    %61 = arith.divf %59, %60 : vector<2x32xf32>
    %c0_45 = arith.constant 0 : index
    %c0_46 = arith.constant 0 : index
    %62 = vector.load %arg5[%c0_45, %c0_46] : memref<32x4xf32, #tpu.memory_space<vmem>>, vector<32x4xf32>
    %cst_47 = arith.constant dense<0.000000e+00> : vector<2x4xf32>
    %63 = tpu.matmul %61, %62, %cst_47 {dimension_numbers = #tpu.dot_dimension_numbers<[1], [0], [0], [1], [0, 0, 1, 1], [], []>} : vector<2x32xf32>, vector<32x4xf32>, vector<2x4xf32> -> vector<2x4xf32>
    %c0_48 = arith.constant 0 : index
    %c0_49 = arith.constant 0 : index
    %64 = vector.load %arg6[%c0_48, %c0_49] : memref<1x4xf32, #tpu.memory_space<vmem>>, vector<1x4xf32>
    %65 = vector.broadcast %64 : vector<1x4xf32> to vector<2x4xf32>
    %66 = arith.addf %63, %65 : vector<2x4xf32>
    %cst_50 = arith.constant 1.000000e+00 : f32
    %67 = vector.broadcast %cst_50 : f32 to vector<2x4xf32>
    %68 = arith.mulf %66, %67 : vector<2x4xf32>
    %cst_51 = arith.constant dense<0xFF800000> : vector<2xf32>
    %69 = vector.multi_reduction <maximumf>, %68, %cst_51 [1] : vector<2x4xf32> to vector<2xf32>
    %70 = vector.shape_cast %69 : vector<2xf32> to vector<2x1xf32>
    %71 = vector.broadcast %70 : vector<2x1xf32> to vector<2x4xf32>
    %72 = arith.subf %68, %71 : vector<2x4xf32>
    %73 = math.exp %72 : vector<2x4xf32>
    %cst_52 = arith.constant dense<0.000000e+00> : vector<2xf32>
    %74 = vector.multi_reduction <add>, %73, %cst_52 [1] : vector<2x4xf32> to vector<2xf32>
    %75 = vector.shape_cast %74 : vector<2xf32> to vector<2x1xf32>
    %76 = vector.broadcast %75 : vector<2x1xf32> to vector<2x4xf32>
    %77 = arith.divf %73, %76 : vector<2x4xf32>
    %c0_53 = arith.constant 0 : index
    %c0_54 = arith.constant 0 : index
    %78 = vector.load %arg7[%c0_53, %c0_54] : memref<2x4xf32, #tpu.memory_space<vmem>>, vector<2x4xf32>
    tpu.vector_store %arg7[%c0_53, %c0_54], %77 {strides = array<i32>} : memref<2x4xf32, #tpu.memory_space<vmem>>, vector<2x4xf32>,
    return
  }
  func.func @transform_0(%arg0: i32) -> (i32, i32, i32) {
    %c0_i32 = arith.constant 0 : i32
    %c0_i32_0 = arith.constant 0 : i32
    %c0_i32_1 = arith.constant 0 : i32
    %c0_i32_2 = arith.constant 0 : i32
    return %c0_i32, %c0_i32_0, %c0_i32_1 : i32, i32, i32
  }
  func.func @transform_1(%arg0: i32) -> (i32, i32, i32) {
    %c0_i32 = arith.constant 0 : i32
    %c0_i32_0 = arith.constant 0 : i32
    %c0_i32_1 = arith.constant 0 : i32
    %c0_i32_2 = arith.constant 0 : i32
    return %c0_i32, %c0_i32_0, %c0_i32_1 : i32, i32, i32
  }
  func.func @transform_2(%arg0: i32) -> (i32, i32) {
    %c0_i32 = arith.constant 0 : i32
    %c0_i32_0 = arith.constant 0 : i32
    %c0_i32_1 = arith.constant 0 : i32
    return %c0_i32, %c0_i32_0 : i32, i32
  }
  func.func @transform_3(%arg0: i32) -> (i32, i32) {
    %c0_i32 = arith.constant 0 : i32
    %c0_i32_0 = arith.constant 0 : i32
    %c0_i32_1 = arith.constant 0 : i32
    return %c0_i32, %c0_i32_0 : i32, i32
  }
  func.func @transform_4(%arg0: i32) -> (i32, i32) {
    %c0_i32 = arith.constant 0 : i32
    %c0_i32_0 = arith.constant 0 : i32
    %c0_i32_1 = arith.constant 0 : i32
    return %c0_i32, %c0_i32_0 : i32, i32
  }
  func.func @transform_5(%arg0: i32) -> (i32, i32) {
    %c0_i32 = arith.constant 0 : i32
    %c0_i32_0 = arith.constant 0 : i32
    %c0_i32_1 = arith.constant 0 : i32
    return %c0_i32, %c0_i32_0 : i32, i32
  }
  func.func @transform_6(%arg0: i32) -> (i32, i32) {
    %c0_i32 = arith.constant 0 : i32
    %c0_i32_0 = arith.constant 0 : i32
    %c0_i32_1 = arith.constant 0 : i32
    return %c0_i32, %c0_i32_0 : i32, i32
  }
}

</mosaic_0001>

<llo_original>
// kernel: tpu_custom_call.1
$region0: #{tpu_custom_call.1}
  #allocation0 [shape = 'u32[]', space=smem, size = 0x4, offset = 0x4, fixed_abs, tag = 'smem constant byte address 0x4 - core index']
  #allocation1 [shape = 'u32[144,128]{1,0:T(1,128)}', space=vmem, size = 0x12000, scoped, tag = 'internal scratch']
  #allocation2 [shape = 'f32[2,10,128]{2,1,0:T(8,128)}', space=vmem, size = 0x4000, scoped, tag = 'scratch operand']
  %s0 = inlined_call_operand.vmem [shape: f32[2,4,128], index: 0, kind: input, shape index: {}]
  %s1 = inlined_call_operand.vmem [shape: f32[2,4,128], index: 1, kind: input, shape index: {}]
  %s2 = inlined_call_operand.vmem [shape: f32[384,32], index: 2, kind: input, shape index: {}]
  %s3 = inlined_call_operand.vmem [shape: f32[1,32], index: 3, kind: input, shape index: {}]
  %s4 = inlined_call_operand.vmem [shape: f32[32,4], index: 4, kind: input, shape index: {}]
  %s5 = inlined_call_operand.vmem [shape: f32[1,4], index: 5, kind: input, shape index: {}]
  %s6 = inlined_call_operand.hbm [shape: f32[2,4], index: 6, kind: output, shape index: {}]
  %s7 = sld [smem:[#allocation0]]
  $region34: #{tpu_custom_call.1} parent=0
    _
  %s9 = ssub.s32 1, %s7
  %s10 = scalar_select 0, %s9, %s7
  $region1: #{tpu_custom_call.1} parent=0
    #allocation3 [shape = 'u8[1024]{0}', space=vmem, size = 0x400, scoped, tag = 'output window, operand 0, single buffered']
    #allocation4 [shape = 's32[1]{0}', space=sflag, size = 0x4, scoped, tag = 'scoped memory for tpu_custom_call.1']
    %11 = vsyncpa [#allocation4], 0
    // Predicated region
    $region2: #{tpu_custom_call.1} parent=1 // pred_check
      _
    $region3: #{tpu_custom_call.1} parent=1 // pred_check_branch
      %13 = sbr.rel (0) target = $region5
    $region4: #{tpu_custom_call.1} parent=1 // pred_region
      _
    $region5: #{tpu_custom_call.1} parent=1 // pred_fallthru
      _
    // Predicated region
    $region6: #{tpu_custom_call.1} parent=1 // pred_check
      _
    $region7: #{tpu_custom_call.1} parent=1 // pred_check_branch
      %15 = sbr.rel (0) target = $region9
    $region8: #{tpu_custom_call.1} parent=1 // pred_region
      _
    $region9: #{tpu_custom_call.1} parent=1 // pred_fallthru
      _
    // Predicated region
    $region10: #{tpu_custom_call.1} parent=1 // pred_check
      _
    $region11: #{tpu_custom_call.1} parent=1 // pred_check_branch
      %17 = sbr.rel (0) target = $region13
    $region12: #{tpu_custom_call.1} parent=1 // pred_region
      _
    $region13: #{tpu_custom_call.1} parent=1 // pred_fallthru
      _
    // Predicated region
    $region14: #{tpu_custom_call.1} parent=1 // pred_check
      _
    $region15: #{tpu_custom_call.1} parent=1 // pred_check_branch
      %19 = sbr.rel (0) target = $region17
    $region16: #{tpu_custom_call.1} parent=1 // pred_region
      _
    $region17: #{tpu_custom_call.1} parent=1 // pred_fallthru
      _
    // Predicated region
    $region18: #{tpu_custom_call.1} parent=1 // pred_check
      _
    $region19: #{tpu_custom_call.1} parent=1 // pred_check_branch
      %21 = sbr.rel (0) target = $region21
    $region20: #{tpu_custom_call.1} parent=1 // pred_region
      _
    $region21: #{tpu_custom_call.1} parent=1 // pred_fallthru
      _
    // Predicated region
    $region22: #{tpu_custom_call.1} parent=1 // pred_check
      _
    $region23: #{tpu_custom_call.1} parent=1 // pred_check_branch
      %23 = sbr.rel (0) target = $region25
    $region24: #{tpu_custom_call.1} parent=1 // pred_region
      _
    $region25: #{tpu_custom_call.1} parent=1 // pred_fallthru
      _
    %24 = vst [vmem:[#allocation2] sm:$0x1] 0.0
    %25 = vst [vmem:[#allocation2 + $0x10] sm:$0x1] 0.0
    %26 = vst [vmem:[#allocation2 + $0x9] sm:$0x1] 0.0
    %27 = vst [vmem:[#allocation2 + $0x19] sm:$0x1] 0.0
    %v28 = vld [vmem:[%s0] sm:$0xf]
    %v29 = vld [vmem:[%s0 + $0x4] sm:$0xf]
    %30 = vst [vmem:[#allocation2 + $0x1] sm:$0xf] %v28
    %31 = vst [vmem:[#allocation2 + $0x11] sm:$0xf] %v29
    %v32 = vld [vmem:[%s1] sm:$0xf]
    %v33 = vld [vmem:[%s1 + $0x4] sm:$0xf]
    %34 = vst [vmem:[#allocation2 + $0x5] sm:$0xf] %v32
    %35 = vst [vmem:[#allocation2 + $0x15] sm:$0xf] %v33
    %v36 = vld [vmem:[#allocation2] sm:$0xff]
    %v37 = vld [vmem:[#allocation2 + $0x10] sm:$0xff]
    %v38 = vld [vmem:[#allocation2 + $0x1] sm:$0xff]
    %v39 = vld [vmem:[#allocation2 + $0x11] sm:$0xff]
    %v40 = vld [vmem:[#allocation2 + $0x2] sm:$0xff]
    %v41 = vld [vmem:[#allocation2 + $0x12] sm:$0xff]
    %v42 = vld [vmem:[%s2] sm:$0xff]
    %v43 = vld [vmem:[%s2 + $0x8] sm:$0xff]
    %v44 = vld [vmem:[%s2 + $0x10] sm:$0xff]
    %v45 = vld [vmem:[%s2 + $0x18] sm:$0xff]
    %v46 = vld [vmem:[%s2 + $0x20] sm:$0xff]
    %v47 = vld [vmem:[%s2 + $0x28] sm:$0xff]
    %v48 = vld [vmem:[%s2 + $0x30] sm:$0xff]
    %v49 = vld [vmem:[%s2 + $0x38] sm:$0xff]
    %v50 = vld [vmem:[%s2 + $0x40] sm:$0xff]
    %v51 = vld [vmem:[%s2 + $0x48] sm:$0xff]
    %v52 = vld [vmem:[%s2 + $0x50] sm:$0xff]
    %v53 = vld [vmem:[%s2 + $0x58] sm:$0xff]
    %v54 = vld [vmem:[%s2 + $0x60] sm:$0xff]
    %v55 = vld [vmem:[%s2 + $0x68] sm:$0xff]
    %v56 = vld [vmem:[%s2 + $0x70] sm:$0xff]
    %v57 = vld [vmem:[%s2 + $0x78] sm:$0xff]
    %v58 = vld [vmem:[%s2 + $0x80] sm:$0xff]
    %v59 = vld [vmem:[%s2 + $0x88] sm:$0xff]
    %v60 = vld [vmem:[%s2 + $0x90] sm:$0xff]
    %v61 = vld [vmem:[%s2 + $0x98] sm:$0xff]
    %v62 = vld [vmem:[%s2 + $0xa0] sm:$0xff]
    %v63 = vld [vmem:[%s2 + $0xa8] sm:$0xff]
    %v64 = vld [vmem:[%s2 + $0xb0] sm:$0xff]
    %v65 = vld [vmem:[%s2 + $0xb8] sm:$0xff]
    %v66 = vld [vmem:[%s2 + $0xc0] sm:$0xff]
    %v67 = vld [vmem:[%s2 + $0xc8] sm:$0xff]
    %v68 = vld [vmem:[%s2 + $0xd0] sm:$0xff]
    %v69 = vld [vmem:[%s2 + $0xd8] sm:$0xff]
    %v70 = vld [vmem:[%s2 + $0xe0] sm:$0xff]
    %v71 = vld [vmem:[%s2 + $0xe8] sm:$0xff]
    %v72 = vld [vmem:[%s2 + $0xf0] sm:$0xff]
    %v73 = vld [vmem:[%s2 + $0xf8] sm:$0xff]
    %v74 = vld [vmem:[%s2 + $0x100] sm:$0xff]
    %v75 = vld [vmem:[%s2 + $0x108] sm:$0xff]
    %v76 = vld [vmem:[%s2 + $0x110] sm:$0xff]
    %v77 = vld [vmem:[%s2 + $0x118] sm:$0xff]
    %v78 = vld [vmem:[%s2 + $0x120] sm:$0xff]
    %v79 = vld [vmem:[%s2 + $0x128] sm:$0xff]
    %v80 = vld [vmem:[%s2 + $0x130] sm:$0xff]
    %v81 = vld [vmem:[%s2 + $0x138] sm:$0xff]
    %v82 = vld [vmem:[%s2 + $0x140] sm:$0xff]
    %v83 = vld [vmem:[%s2 + $0x148] sm:$0xff]
    %v84 = vld [vmem:[%s2 + $0x150] sm:$0xff]
    %v85 = vld [vmem:[%s2 + $0x158] sm:$0xff]
    %v86 = vld [vmem:[%s2 + $0x160] sm:$0xff]
    %v87 = vld [vmem:[%s2 + $0x168] sm:$0xff]
    %v88 = vld [vmem:[%s2 + $0x170] sm:$0xff]
    %v89 = vld [vmem:[%s2 + $0x178] sm:$0xff]
    %v90 = vld [vmem:[%s3] sm:$0x1]
    %v92 = vlaneseq
    %v93 = vshrl.u32 %v92, 7
    %v94 = vsub.s32 0, %v93
    %v95 = vrot.slane %v90, %v94
    %97 = vmatprep.subr.mxu0 0.0
    %98 = vmatpush1.msra.mxu0 %v42
    %99 = vmatprep.subr.mxu0 0.0
    %100 = vmatpush1.msra.mxu0 %v43
    %101 = vmatprep.subr.mxu0 0.0
    %102 = vmatpush1.msra.mxu0 %v44
    %103 = vmatprep.subr.mxu0 0.0
    %104 = vmatpush1.msra.mxu0 %v45
    %105 = vmatprep.subr.mxu0 0.0
    %106 = vmatpush1.msra.mxu0 %v46
    %107 = vmatprep.subr.mxu0 0.0
    %108 = vmatpush1.msra.mxu0 %v47
    %109 = vmatprep.subr.mxu0 0.0
    %110 = vmatpush1.msra.mxu0 %v48
    %111 = vmatprep.subr.mxu0 0.0
    %112 = vmatpush1.msra.mxu0 %v49
    %113 = vmatprep.subr.mxu0 0.0
    %114 = vmatpush1.msra.mxu0 %v50
    %115 = vmatprep.subr.mxu0 0.0
    %116 = vmatpush1.msra.mxu0 %v51
    %117 = vmatprep.subr.mxu0 0.0
    %118 = vmatpush1.msra.mxu0 %v52
    %119 = vmatprep.subr.mxu0 0.0
    %120 = vmatpush1.msra.mxu0 %v53
    %121 = vmatprep.subr.mxu0 0.0
    %122 = vmatpush1.msra.mxu0 %v54
    %123 = vmatprep.subr.mxu0 0.0
    %124 = vmatpush1.msra.mxu0 %v55
    %125 = vmatprep.subr.mxu0 0.0
    %126 = vmatpush1.msra.mxu0 %v56
    %127 = vmatprep.subr.mxu0 0.0
    %128 = vmatpush1.msra.mxu0 %v57
    %129 = vmatprep.subr.mxu0 0.0
    %130 = vmatpush1.msra.mxu0 %v58
    %131 = vmatprep.subr.mxu0 0.0
    %132 = vmatpush1.msra.mxu0 %v59
    %133 = vmatprep.subr.mxu0 0.0
    %134 = vmatpush1.msra.mxu0 %v60
    %135 = vmatprep.subr.mxu0 0.0
    %136 = vmatpush1.msra.mxu0 %v61
    %137 = vmatprep.subr.mxu0 0.0
    %138 = vmatpush1.msra.mxu0 %v62
    %139 = vmatprep.subr.mxu0 0.0
    %140 = vmatpush1.msra.mxu0 %v63
    %141 = vmatprep.subr.mxu0 0.0
    %142 = vmatpush1.msra.mxu0 %v64
    %143 = vmatprep.subr.mxu0 0.0
    %144 = vmatpush1.msra.mxu0 %v65
    %145 = vmatprep.subr.mxu0 0.0
    %146 = vmatpush1.msra.mxu0 %v66
    %147 = vmatprep.subr.mxu0 0.0
    %148 = vmatpush1.msra.mxu0 %v67
    %149 = vmatprep.subr.mxu0 0.0
    %150 = vmatpush1.msra.mxu0 %v68
    %151 = vmatprep.subr.mxu0 0.0
    %152 = vmatpush1.msra.mxu0 %v69
    %153 = vmatprep.subr.mxu0 0.0
    %154 = vmatpush1.msra.mxu0 %v70
    %155 = vmatprep.subr.mxu0 0.0
    %156 = vmatpush1.msra.mxu0 %v71
    %157 = vmatprep.subr.mxu0 0.0
    %158 = vmatpush1.msra.mxu0 %v72
    %159 = vmatprep.subr.mxu0 0.0
    %160 = vmatpush1.msra.mxu0 %v73
    %161 = vmatprep.mubr.f32.mxu0 %v38
    %162 = vmatmul.mubr.f32.gmra.mrb[0].mxu0 %v36
    %v163 = vpop.f32.mrb[0].mxu0
    %v164 = vadd.f32 %v95, %v163
    %v165 = vpop.f32.mrb[0].mxu0
    %166 = vmatprep.mubr.f32.mxu0 %v39
    %167 = vmatmul.mubr.f32.gmra.mrb[0].mxu0 %v37
    %v168 = vpop.f32.mrb[0].mxu0
    %v169 = vadd.f32 %v95, %v168
    %v170 = vpop.f32.mrb[0].mxu0
    %171 = vdwg.mxu0
    %172 = vmatprep.subr.mxu0 0.0
    %173 = vmatpush1.msra.mxu0 %v74
    %174 = vmatprep.subr.mxu0 0.0
    %175 = vmatpush1.msra.mxu0 %v75
    %176 = vmatprep.subr.mxu0 0.0
    %177 = vmatpush1.msra.mxu0 %v76
    %178 = vmatprep.subr.mxu0 0.0
    %179 = vmatpush1.msra.mxu0 %v77
    %180 = vmatprep.subr.mxu0 0.0
    %181 = vmatpush1.msra.mxu0 %v78
    %182 = vmatprep.subr.mxu0 0.0
    %183 = vmatpush1.msra.mxu0 %v79
    %184 = vmatprep.subr.mxu0 0.0
    %185 = vmatpush1.msra.mxu0 %v80
    %186 = vmatprep.subr.mxu0 0.0
    %187 = vmatpush1.msra.mxu0 %v81
    %188 = vmatprep.subr.mxu0 0.0
    %189 = vmatpush1.msra.mxu0 %v82
    %190 = vmatprep.subr.mxu0 0.0
    %191 = vmatpush1.msra.mxu0 %v83
    %192 = vmatprep.subr.mxu0 0.0
    %193 = vmatpush1.msra.mxu0 %v84
    %194 = vmatprep.subr.mxu0 0.0
    %195 = vmatpush1.msra.mxu0 %v85
    %196 = vmatprep.subr.mxu0 0.0
    %197 = vmatpush1.msra.mxu0 %v86
    %198 = vmatprep.subr.mxu0 0.0
    %199 = vmatpush1.msra.mxu0 %v87
    %200 = vmatprep.subr.mxu0 0.0
    %201 = vmatpush1.msra.mxu0 %v88
    %202 = vmatprep.subr.mxu0 0.0
    %203 = vmatpush1.msra.mxu0 %v89
    %204 = vmatprep.subr.mxu0 0.0
    %205 = vmatpush1.msra.mxu0 0.0
    %206 = vmatprep.subr.mxu0 0.0
    %207 = vmatpush1.msra.mxu0 0.0
    %208 = vmatprep.subr.mxu0 0.0
    %209 = vmatpush1.msra.mxu0 0.0
    %210 = vmatprep.subr.mxu0 0.0
    %211 = vmatpush1.msra.mxu0 0.0
    %212 = vmatprep.subr.mxu0 0.0
    %213 = vmatpush1.msra.mxu0 0.0
    %214 = vmatprep.subr.mxu0 0.0
    %215 = vmatpush1.msra.mxu0 0.0
    %216 = vmatprep.subr.mxu0 0.0
    %217 = vmatpush1.msra.mxu0 0.0
    %218 = vmatprep.subr.mxu0 0.0
    %219 = vmatpush1.msra.mxu0 0.0
    %220 = vmatprep.subr.mxu0 0.0
    %221 = vmatpush1.msra.mxu0 0.0
    %222 = vmatprep.subr.mxu0 0.0
    %223 = vmatpush1.msra.mxu0 0.0
    %224 = vmatprep.subr.mxu0 0.0
    %225 = vmatpush1.msra.mxu0 0.0
    %226 = vmatprep.subr.mxu0 0.0
    %227 = vmatpush1.msra.mxu0 0.0
    %228 = vmatprep.subr.mxu0 0.0
    %229 = vmatpush1.msra.mxu0 0.0
    %230 = vmatprep.subr.mxu0 0.0
    %231 = vmatpush1.msra.mxu0 0.0
    %232 = vmatprep.subr.mxu0 0.0
    %233 = vmatpush1.msra.mxu0 0.0
    %234 = vmatprep.subr.mxu0 0.0
    %235 = vmatpush1.msra.mxu0 0.0
    %236 = vmatprep.mubr.f32.mxu0 0.0
    %237 = vmatmul.mubr.f32.gmra.mrb[0].mxu0 %v40
    %v238 = vpop.f32.mrb[0].mxu0
    %v239 = vadd.f32 %v164, %v238
    %v240 = vpop.f32.mrb[0].mxu0
    %241 = vmatprep.mubr.f32.mxu0 0.0
    %242 = vmatmul.mubr.f32.gmra.mrb[0].mxu0 %v41
    %v243 = vpop.f32.mrb[0].mxu0
    %v244 = vadd.f32 %v169, %v243
    %v245 = vpop.f32.mrb[0].mxu0
    %246 = vdwg.mxu0
    %v247 = vmul.f32 %v239, 0.5
    %v248 = vmul.f32 %v244, 0.5
    %v249 = vmul.f32 %v239, 0.70710677
    %v250 = vmul.f32 %v244, 0.70710677
    %vm251 = vcmp.ge.f32.partialorder %v249, 0.0
    %vm252 = vcmp.ge.f32.partialorder %v250, 0.0
    %v253 = vsel %vm251, 1.0, -1.0
    %v254 = vsel %vm252, 1.0, -1.0
    %v255 = vand.u32 2147483647, %v249
    %v256 = vand.u32 2147483647, %v250
    %v257 = vmul.f32 %v255, 0.3275911
    %v258 = vmul.f32 %v256, 0.3275911
    %v259 = vadd.f32 %v257, 1.0
    %v260 = vadd.f32 %v258, 1.0
    %v261 = vrcp.pop %v259
    %v262 = vmul.f32 1.0, %v261
    %v263 = vrcp.pop %v260
    %v264 = vmul.f32 1.0, %v263
    %v265 = vmul.f32 %v262, 1.0614054
    %v266 = vmul.f32 %v264, 1.0614054
    %v267 = vadd.f32 %v265, -1.4531521
    %v268 = vadd.f32 %v266, -1.4531521
    %v269 = vmul.f32 %v267, %v262
    %v270 = vmul.f32 %v268, %v264
    %v271 = vadd.f32 %v269, 1.4214138
    %v272 = vadd.f32 %v270, 1.4214138
    %v273 = vmul.f32 %v271, %v262
    %v274 = vmul.f32 %v272, %v264
    %v275 = vadd.f32 %v273, -0.28449672
    %v276 = vadd.f32 %v274, -0.28449672
    %v277 = vmul.f32 %v275, %v262
    %v278 = vmul.f32 %v276, %v264
    %v279 = vadd.f32 %v277, 0.2548296
    %v280 = vadd.f32 %v278, 0.2548296
    %v281 = vmul.f32 %v279, %v262
    %v282 = vmul.f32 %v280, %v264
    %v283 = vsub.f32 0.0, %v255
    %v284 = vsub.f32 0.0, %v256
    %v285 = vmul.f32 %v283, %v255
    %v286 = vmul.f32 %v284, %v256
    %v287 = vmul.f32 %v285, 1.442695
    %v288 = vpow.pop %v287
    %v289 = vmul.f32 %v286, 1.442695
    %v290 = vpow.pop %v289
    %v291 = vmul.f32 %v281, %v288
    %v292 = vmul.f32 %v282, %v290
    %v293 = vsub.f32 1.0, %v291
    %v294 = vsub.f32 1.0, %v292
    %v295 = vmul.f32 %v253, %v293
    %v296 = vmul.f32 %v254, %v294
    %v297 = vadd.f32 %v295, 1.0
    %v298 = vadd.f32 %v296, 1.0
    %v299 = vmul.f32 %v247, %v297
    %v300 = vmul.f32 %v248, %v298
    %vm301 = vcmask 261120
    %v302 = vsel %vm301, %v299, 0.0
    %v303 = vrot.slane %v302, 4
    %v304 = vadd.f32 %v302, %v303
    %v305 = vrot.slane %v304, 2
    %v306 = vadd.f32 %v304, %v305
    %v307 = vrot.slane %v306, 1
    %v308 = vadd.f32 %v306, %v307
    %v309 = vsel %vm301, %v300, 0.0
    %v310 = vrot.slane %v309, 4
    %v311 = vadd.f32 %v309, %v310
    %v312 = vrot.slane %v311, 2
    %v313 = vadd.f32 %v311, %v312
    %v314 = vrot.slane %v313, 1
    %v315 = vadd.f32 %v313, %v314
    %v316 = vrcp.pop 8.0
    %v317 = vmul.f32 %v308, %v316
    %v318 = vmul.f32 %v315, %v316
    %v319 = vld [vmem:[%s4] sm:$0xff]
    %v320 = vld [vmem:[%s4 + $0x8] sm:$0xff]
    %v321 = vld [vmem:[%s4 + $0x10] sm:$0xff]
    %v322 = vld [vmem:[%s4 + $0x18] sm:$0xff]
    %v323 = vld [vmem:[%s5] sm:$0x1]
    %v325 = vlaneseq
    %v326 = vshrl.u32 %v325, 7
    %v327 = vsub.s32 0, %v326
    %v328 = vrot.slane %v323, %v327
    %vm332 = vcmask 1041409
    %v333 = vsel %vm332, %v318, %v317
    %v334 = vsel %vm301, %v333, 0
    %336 = vmatprep.subr.mxu0 0.0
    %337 = vmatpush1.msra.mxu0 %v319
    %338 = vmatprep.subr.mxu0 0.0
    %339 = vmatpush1.msra.mxu0 %v320
    %340 = vmatprep.subr.mxu0 0.0
    %341 = vmatpush1.msra.mxu0 %v321
    %342 = vmatprep.subr.mxu0 0.0
    %343 = vmatpush1.msra.mxu0 %v322
    %344 = vmatprep.subr.mxu0 0.0
    %345 = vmatpush1.msra.mxu0 0.0
    %346 = vmatprep.subr.mxu0 0.0
    %347 = vmatpush1.msra.mxu0 0.0
    %348 = vmatprep.subr.mxu0 0.0
    %349 = vmatpush1.msra.mxu0 0.0
    %350 = vmatprep.subr.mxu0 0.0
    %351 = vmatpush1.msra.mxu0 0.0
    %352 = vmatprep.subr.mxu0 0.0
    %353 = vmatpush1.msra.mxu0 0.0
    %354 = vmatprep.subr.mxu0 0.0
    %355 = vmatpush1.msra.mxu0 0.0
    %356 = vmatprep.subr.mxu0 0.0
    %357 = vmatpush1.msra.mxu0 0.0
    %358 = vmatprep.subr.mxu0 0.0
    %359 = vmatpush1.msra.mxu0 0.0
    %360 = vmatprep.subr.mxu0 0.0
    %361 = vmatpush1.msra.mxu0 0.0
    %362 = vmatprep.subr.mxu0 0.0
    %363 = vmatpush1.msra.mxu0 0.0
    %364 = vmatprep.subr.mxu0 0.0
    %365 = vmatpush1.msra.mxu0 0.0
    %366 = vmatprep.subr.mxu0 0.0
    %367 = vmatpush1.msra.mxu0 0.0
    %368 = vmatprep.subr.mxu0 0.0
    %369 = vmatpush1.msra.mxu0 0.0
    %370 = vmatprep.subr.mxu0 0.0
    %371 = vmatpush1.msra.mxu0 0.0
    %372 = vmatprep.subr.mxu0 0.0
    %373 = vmatpush1.msra.mxu0 0.0
    %374 = vmatprep.subr.mxu0 0.0
    %375 = vmatpush1.msra.mxu0 0.0
    %376 = vmatprep.subr.mxu0 0.0
    %377 = vmatpush1.msra.mxu0 0.0
    %378 = vmatprep.subr.mxu0 0.0
    %379 = vmatpush1.msra.mxu0 0.0
    %380 = vmatprep.subr.mxu0 0.0
    %381 = vmatpush1.msra.mxu0 0.0
    %382 = vmatprep.subr.mxu0 0.0
    %383 = vmatpush1.msra.mxu0 0.0
    %384 = vmatprep.subr.mxu0 0.0
    %385 = vmatpush1.msra.mxu0 0.0
    %386 = vmatprep.subr.mxu0 0.0
    %387 = vmatpush1.msra.mxu0 0.0
    %388 = vmatprep.subr.mxu0 0.0
    %389 = vmatpush1.msra.mxu0 0.0
    %390 = vmatprep.subr.mxu0 0.0
    %391 = vmatpush1.msra.mxu0 0.0
    %392 = vmatprep.subr.mxu0 0.0
    %393 = vmatpush1.msra.mxu0 0.0
    %394 = vmatprep.subr.mxu0 0.0
    %395 = vmatpush1.msra.mxu0 0.0
    %396 = vmatprep.subr.mxu0 0.0
    %397 = vmatpush1.msra.mxu0 0.0
    %398 = vmatprep.subr.mxu0 0.0
    %399 = vmatpush1.msra.mxu0 0.0
    %400 = vmatprep.mubr.f32.mxu0 0.0
    %401 = vmatmul.mubr.f32.gmra.mrb[0].mxu0 %v334
    %v402 = vpop.f32.mrb[0].mxu0
    %v403 = vadd.f32 %v328, %v402
    %v404 = vpop.f32.mrb[0].mxu0
    %405 = vdwg.mxu0
    %vm406 = vcmask 25600
    %v407 = vsel %vm406, %v403, -inf
    %408 = vmax.xlane.f32.xlu0 %v407
    %v409 = vpop.xlane.xlu0 %408
    %v410 = vsub.f32 %v403, %v409
    %v411 = vmul.f32 %v410, 1.442695
    %v412 = vpow.pop %v411
    %v413 = vsel %vm406, %v412, 0.0
    %414 = vadd.xlane.f32.xlu0 %v413
    %v415 = vpop.xlane.xlu0 %414
    %v416 = vrcp.pop %v415
    %v417 = vmul.f32 %v412, %v416
    %418 = vst.msk [vmem:[#allocation3] sm:$0x3] %vm406, %v417
    // Predicated region
    $region26: #{tpu_custom_call.1} parent=1 // pred_check
      _
    $region27: #{tpu_custom_call.1} parent=1 // pred_check_branch
      %420 = sbr.rel (0) target = $region29
    $region28: #{tpu_custom_call.1} parent=1 // pred_region
      %s422 = ssub.s32 32, 32
      %423 = vsyncadd [#allocation4], %s422
      %s425 = sshll.u32 [#allocation3], 4
      %s426 = int_to_ptr.vmem [resolvable:$true] %s425
      %428 = dma.vmem_to_hbm [thread:$0]  %s426, 32, %s6, [#allocation4]
    $region29: #{tpu_custom_call.1} parent=1 // pred_fallthru
      _
    // Predicated region
    $region30: #{tpu_custom_call.1} parent=1 // pred_check
      _
    $region31: #{tpu_custom_call.1} parent=1 // pred_check_branch
      %430 = sbr.rel (0) target = $region33
    $region32: #{tpu_custom_call.1} parent=1 // pred_region
      %431 = dma.done [#allocation4], 32
    $region33: #{tpu_custom_call.1} parent=1 // pred_fallthru
      _
    %432 = vsyncpa [#allocation4], 1

</llo_original>
